<compile_context>
chip_gen: v5e
topology: v5e:2x2
jax: 0.10.0
libtpu: 0.0.40
codegen_flags: <defaults>
</compile_context>

<pallas_src>
import functools

import jax
import jax.numpy as jnp
from jax.experimental import pallas as pl
from jax.experimental.pallas import tpu as pltpu


def _round_up(x: int, m: int) -> int:
    return ((x + m - 1) // m) * m


def _vbn_kernel(x_ref, params_ref, out_ref, stats_ref, *, eps: float,
                new_coeff: float):
    # x_ref:      (B, TF)  input tile (x.dtype)
    # params_ref: (4, TF)  f32 rows: [gamma, beta, ref_mean, ref_mean_sq]
    # out_ref:    (B, TF)  normalized output (x.dtype)
    # stats_ref:  (2, TF)  f32 rows: [mean, mean_sq]
    x = x_ref[...].astype(jnp.float32)                      # (B, TF)

    gamma = params_ref[0:1, :]                              # (1, TF)
    beta = params_ref[1:2, :]
    ref_mean = params_ref[2:3, :]
    ref_mean_sq = params_ref[3:4, :]

    old_coeff = 1.0 - new_coeff

    # Batch statistics over axis 0 (keepdim) for this feature tile.
    mean = jnp.mean(x, axis=0, keepdims=True)               # (1, TF)
    mean_sq = jnp.mean(x * x, axis=0, keepdims=True)        # (1, TF)

    # Blend with reference-batch statistics (new_coeff == 1.0 on the
    # reference pass, with zero ref stats -> pure batch stats).
    mean = new_coeff * mean + old_coeff * ref_mean
    mean_sq = new_coeff * mean_sq + old_coeff * ref_mean_sq

    # Per-feature inverse std; fold gamma/beta into scale/shift so the
    # per-element work is a single fused mul-add on the VPU.
    inv_std = jax.lax.rsqrt(eps + mean_sq - mean * mean)    # (1, TF)
    scale = gamma * inv_std                                 # (1, TF)
    shift = beta - mean * scale                             # (1, TF)

    out_ref[...] = (x * scale + shift).astype(out_ref.dtype)
    stats_ref[0:1, :] = mean
    stats_ref[1:2, :] = mean_sq


def virtual_batch_norm_1d(x, gamma, beta, ref_mean=None, ref_mean_sq=None,
                          eps: float = 1e-5):
    """Forward pass of VirtualBatchNorm1d.

    Args:
      x:        (B, F) input activations.
      gamma:    (1, F) scale.
      beta:     (1, F) shift.
      ref_mean, ref_mean_sq: (1, F) reference-batch stats, or None for the
        first (reference) forward pass.

    Returns:
      (out, mean, mean_sq) — matching the PyTorch module's return tuple.
    """
    B, F = x.shape

    has_ref = (ref_mean is not None) and (ref_mean_sq is not None)
    # Blend coefficient is a trace-time constant (no SMEM scalar needed).
    new_coeff = (1.0 / (B + 1.0)) if has_ref else 1.0

    gamma_f = gamma.reshape(1, F).astype(jnp.float32)
    beta_f = beta.reshape(1, F).astype(jnp.float32)
    if has_ref:
        refm = ref_mean.reshape(1, F).astype(jnp.float32)
        refmsq = ref_mean_sq.reshape(1, F).astype(jnp.float32)
    else:
        refm = jnp.zeros((1, F), jnp.float32)
        refmsq = jnp.zeros((1, F), jnp.float32)

    itemsize = jnp.dtype(x.dtype).itemsize

    # Per-generation VMEM budget (v5e/v6e: 128 MiB physical, v7x: 64 MiB).
    try:
        vmem_cap = int(pltpu.get_tpu_info().vmem_capacity_bytes)
    except Exception:
        vmem_cap = 64 * 1024 * 1024     # conservative: works on all gens
    vmem_limit = max(32 << 20, min(vmem_cap - (8 << 20), 112 << 20))
    budget = (vmem_limit * 3) // 4

    # Largest lane tile (multiple of 128) whose double-buffered x/out blocks,
    # their f32 working copies, and the small params/stats blocks fit.
    f_round = _round_up(F, 128)
    per_lane = B * (4 * itemsize + 8) + 48   # 2x(x)+2x(out) bufs, f32 temps,
    slack = 2 << 20                          # params/stats blocks, scratch
    max_k = f_round // 128
    avail = budget - slack
    if avail > per_lane * 128:
        k = max(1, min(max_k, avail // (per_lane * 128)))
    else:
        k = 1
    tile_f = k * 128

    if per_lane * tile_f + slack > budget:
        # TODO(synk): for very large B add a B-tiled two-pass path (grid axis
        # over B with resident sum/sum_sq accumulators); for now raise the
        # scoped VMEM limit as far as physical allows.
        vmem_limit = max(vmem_limit,
                         min(vmem_cap - (4 << 20),
                             per_lane * tile_f + (8 << 20)))

    # v7x megacore: give the "parallel" grid axis >= 2 steps when F allows so
    # both TensorCores get work (harmless on v5e/v6e).
    if tile_f >= f_round and f_round >= 256:
        tile_f = min(tile_f, _round_up(f_round // 2, 128))

    num_tiles = (F + tile_f - 1) // tile_f
    grid = (num_tiles,)

    # Stack the four (1, F) row vectors into one array: a single small
    # per-step DMA instead of four, with exact tile coverage (only these tiny
    # rows are padded — the full activation tensor is NOT padded; Pallas
    # masks the ragged last x/out tile).
    params = jnp.concatenate([gamma_f, beta_f, refm, refmsq], axis=0)  # (4,F)
    pad_f = num_tiles * tile_f - F
    if pad_f:
        params = jnp.pad(params, ((0, 0), (0, pad_f)))

    kernel = functools.partial(_vbn_kernel, eps=eps, new_coeff=new_coeff)

    out, stats = pl.pallas_call(
        kernel,
        out_shape=(
            jax.ShapeDtypeStruct((B, F), x.dtype),
            jax.ShapeDtypeStruct((2, F), jnp.float32),
        ),
        grid=grid,
        in_specs=[
            pl.BlockSpec((B, tile_f), lambda j: (0, j)),   # x
            pl.BlockSpec((4, tile_f), lambda j: (0, j)),   # [gamma,beta,rm,rmsq]
        ],
        out_specs=(
            pl.BlockSpec((B, tile_f), lambda j: (0, j)),   # out
            pl.BlockSpec((2, tile_f), lambda j: (0, j)),   # [mean, mean_sq]
        ),
        compiler_params=pltpu.CompilerParams(
            dimension_semantics=("parallel",),
            vmem_limit_bytes=int(vmem_limit),
        ),
    )(x, params)

    mean = stats[0:1, :]
    mean_sq = stats[1:2, :]
    return out, mean, mean_sq


def _reference_vbn(x, gamma, beta, ref_mean, ref_mean_sq, eps=1e-5):
    """Pure-JAX reference mirroring the PyTorch forward."""
    x = x.astype(jnp.float32)
    mean = jnp.mean(x, axis=0, keepdims=True)
    mean_sq = jnp.mean(x * x, axis=0, keepdims=True)
    if ref_mean is not None and ref_mean_sq is not None:
        B = x.shape[0]
        nc = 1.0 / (B + 1.0)
        oc = 1.0 - nc
        mean = nc * mean + oc * ref_mean
        mean_sq = nc * mean_sq + oc * ref_mean_sq
    std = jnp.sqrt(eps + mean_sq - mean ** 2)
    out = (x - mean) / std * gamma + beta
    return out, mean, mean_sq


if __name__ == "__main__":
    key = jax.random.PRNGKey(0)
    k_gamma, k_ref, k_x = jax.random.split(key, 3)

    num_features = 32
    batch = 8

    # Deterministic parameter init (matches torch init semantics):
    #   gamma ~ Normal(mean=1, std=0.02), beta = 0
    gamma = 1.0 + 0.02 * jax.random.normal(k_gamma, (1, num_features), jnp.float32)
    beta = jnp.zeros((1, num_features), jnp.float32)

    # Reference batch + training batch.
    x_ref_batch = jax.random.normal(k_ref, (batch, num_features), jnp.float32)
    x_train = jax.random.normal(k_x, (batch, num_features), jnp.float32)

    # Pass 1: reference batch (ref_mean=None).
    out1, mean1, mean_sq1 = virtual_batch_norm_1d(x_ref_batch, gamma, beta,
                                                  None, None)
    jax.block_until_ready((out1, mean1, mean_sq1))

    # Pass 2: training batch, using the reference statistics.
    out2, mean2, mean_sq2 = virtual_batch_norm_1d(x_train, gamma, beta,
                                                  mean1, mean_sq1)
    jax.block_until_ready((out2, mean2, mean_sq2))

    # Validate against the pure-JAX reference.
    r_out1, r_mean1, r_msq1 = _reference_vbn(x_ref_batch, gamma, beta, None, None)
    r_out2, r_mean2, r_msq2 = _reference_vbn(x_train, gamma, beta, r_mean1, r_msq1)

    assert jnp.allclose(out1, r_out1, atol=1e-5, rtol=1e-5)
    assert jnp.allclose(mean1, r_mean1, atol=1e-6, rtol=1e-6)
    assert jnp.allclose(mean_sq1, r_msq1, atol=1e-6, rtol=1e-6)
    assert jnp.allclose(out2, r_out2, atol=1e-5, rtol=1e-5)
    assert jnp.allclose(mean2, r_mean2, atol=1e-6, rtol=1e-6)
    assert jnp.allclose(mean_sq2, r_msq2, atol=1e-6, rtol=1e-6)

    print("KERNEL_OK")
</pallas_src>

<mosaic_0001>
module attributes {stable_mosaic.version = 11 : i64} {
  func.func @_vbn_kernel(%arg0: i32, %arg1: memref<8x128xf32, #tpu.memory_space<vmem>>, %arg2: memref<4x128xf32, #tpu.memory_space<vmem>>, %arg3: memref<8x128xf32, #tpu.memory_space<vmem>>, %arg4: memref<2x128xf32, #tpu.memory_space<vmem>>) attributes {dimension_semantics = [#tpu.dimension_semantics<parallel>], iteration_bounds = array<i64: 1>, scalar_prefetch = 0 : i64, scratch_operands = 0 : i64, tpu.core_type = #tpu.core_type<tc>, window_params = [{transform_indices = @transform_0, window_bounds = array<i64: 8, 128>}, {transform_indices = @transform_1, window_bounds = array<i64: 4, 128>}, {transform_indices = @transform_2, window_bounds = array<i64: 8, 128>}, {transform_indices = @transform_3, window_bounds = array<i64: 2, 128>}]} {
    %c0 = arith.constant 0 : index
    %c0_0 = arith.constant 0 : index
    %0 = vector.load %arg1[%c0, %c0_0] : memref<8x128xf32, #tpu.memory_space<vmem>>, vector<8x128xf32>
    %c0_1 = arith.constant 0 : index
    %c0_2 = arith.constant 0 : index
    %1 = vector.load %arg2[%c0_1, %c0_2] : memref<4x128xf32, #tpu.memory_space<vmem>>, vector<1x128xf32>
    %c1 = arith.constant 1 : index
    %c0_3 = arith.constant 0 : index
    %2 = vector.load %arg2[%c1, %c0_3] : memref<4x128xf32, #tpu.memory_space<vmem>>, vector<1x128xf32>
    %c2 = arith.constant 2 : index
    %c0_4 = arith.constant 0 : index
    %3 = vector.load %arg2[%c2, %c0_4] : memref<4x128xf32, #tpu.memory_space<vmem>>, vector<1x128xf32>
    %c3 = arith.constant 3 : index
    %c0_5 = arith.constant 0 : index
    %4 = vector.load %arg2[%c3, %c0_5] : memref<4x128xf32, #tpu.memory_space<vmem>>, vector<1x128xf32>
    %cst = arith.constant dense<0.000000e+00> : vector<128xf32>
    %5 = vector.multi_reduction <add>, %0, %cst [0] : vector<8x128xf32> to vector<128xf32>
    %6 = vector.shape_cast %5 : vector<128xf32> to vector<1x128xf32>
    %cst_6 = arith.constant 8.000000e+00 : f32
    %7 = vector.broadcast %cst_6 : f32 to vector<1x128xf32>
    %8 = arith.divf %6, %7 : vector<1x128xf32>
    %9 = arith.mulf %0, %0 : vector<8x128xf32>
    %cst_7 = arith.constant dense<0.000000e+00> : vector<128xf32>
    %10 = vector.multi_reduction <add>, %9, %cst_7 [0] : vector<8x128xf32> to vector<128xf32>
    %11 = vector.shape_cast %10 : vector<128xf32> to vector<1x128xf32>
    %cst_8 = arith.constant 8.000000e+00 : f32
    %12 = vector.broadcast %cst_8 : f32 to vector<1x128xf32>
    %13 = arith.divf %11, %12 : vector<1x128xf32>
    %cst_9 = arith.constant 1.000000e+00 : f32
    %14 = vector.broadcast %cst_9 : f32 to vector<1x128xf32>
    %15 = arith.mulf %14, %8 : vector<1x128xf32>
    %cst_10 = arith.constant 0.000000e+00 : f32
    %16 = vector.broadcast %cst_10 : f32 to vector<1x128xf32>
    %17 = arith.mulf %16, %3 : vector<1x128xf32>
    %18 = arith.addf %15, %17 : vector<1x128xf32>
    %cst_11 = arith.constant 1.000000e+00 : f32
    %19 = vector.broadcast %cst_11 : f32 to vector<1x128xf32>
    %20 = arith.mulf %19, %13 : vector<1x128xf32>
    %cst_12 = arith.constant 0.000000e+00 : f32
    %21 = vector.broadcast %cst_12 : f32 to vector<1x128xf32>
    %22 = arith.mulf %21, %4 : vector<1x128xf32>
    %23 = arith.addf %20, %22 : vector<1x128xf32>
    %cst_13 = arith.constant 9.99999974E-6 : f32
    %24 = vector.broadcast %cst_13 : f32 to vector<1x128xf32>
    %25 = arith.addf %24, %23 : vector<1x128xf32>
    %26 = arith.mulf %18, %18 : vector<1x128xf32>
    %27 = arith.subf %25, %26 : vector<1x128xf32>
    %28 = math.rsqrt %27 : vector<1x128xf32>
    %29 = arith.mulf %1, %28 : vector<1x128xf32>
    %30 = arith.mulf %18, %29 : vector<1x128xf32>
    %31 = arith.subf %2, %30 : vector<1x128xf32>
    %32 = vector.broadcast %29 : vector<1x128xf32> to vector<8x128xf32>
    %33 = arith.mulf %0, %32 : vector<8x128xf32>
    %34 = vector.broadcast %31 : vector<1x128xf32> to vector<8x128xf32>
    %35 = arith.addf %33, %34 : vector<8x128xf32>
    %c0_14 = arith.constant 0 : index
    %c0_15 = arith.constant 0 : index
    %36 = vector.load %arg3[%c0_14, %c0_15] : memref<8x128xf32, #tpu.memory_space<vmem>>, vector<8x128xf32>
    tpu.vector_store %arg3[%c0_14, %c0_15], %35 {strides = array<i32>} : memref<8x128xf32, #tpu.memory_space<vmem>>, vector<8x128xf32>,
    %c0_16 = arith.constant 0 : index
    %c0_17 = arith.constant 0 : index
    %37 = vector.load %arg4[%c0_16, %c0_17] : memref<2x128xf32, #tpu.memory_space<vmem>>, vector<1x128xf32>
    tpu.vector_store %arg4[%c0_16, %c0_17], %18 {strides = array<i32>} : memref<2x128xf32, #tpu.memory_space<vmem>>, vector<1x128xf32>,
    %c1_18 = arith.constant 1 : index
    %c0_19 = arith.constant 0 : index
    %38 = vector.load %arg4[%c1_18, %c0_19] : memref<2x128xf32, #tpu.memory_space<vmem>>, vector<1x128xf32>
    tpu.vector_store %arg4[%c1_18, %c0_19], %23 {strides = array<i32>} : memref<2x128xf32, #tpu.memory_space<vmem>>, vector<1x128xf32>,
    return
  }
  func.func @transform_0(%arg0: i32) -> (i32, i32) {
    %c0_i32 = arith.constant 0 : i32
    %c0_i32_0 = arith.constant 0 : i32
    return %c0_i32, %arg0 : i32, i32
  }
  func.func @transform_1(%arg0: i32) -> (i32, i32) {
    %c0_i32 = arith.constant 0 : i32
    %c0_i32_0 = arith.constant 0 : i32
    return %c0_i32, %arg0 : i32, i32
  }
  func.func @transform_2(%arg0: i32) -> (i32, i32) {
    %c0_i32 = arith.constant 0 : i32
    %c0_i32_0 = arith.constant 0 : i32
    return %c0_i32, %arg0 : i32, i32
  }
  func.func @transform_3(%arg0: i32) -> (i32, i32) {
    %c0_i32 = arith.constant 0 : i32
    %c0_i32_0 = arith.constant 0 : i32
    return %c0_i32, %arg0 : i32, i32
  }
}

</mosaic_0001>

<llo_original>
// kernel: tpu_custom_call.1
$region0: #{tpu_custom_call.1}
  #allocation0 [shape = 'u32[]', space=smem, size = 0x4, offset = 0x4, fixed_abs, tag = 'smem constant byte address 0x4 - core index']
  #allocation1 [shape = 'u32[72,128]{1,0:T(1,128)}', space=vmem, size = 0x9000, scoped, tag = 'internal scratch']
  %s0 = inlined_call_operand.hbm [shape: f32[8,32], index: 0, kind: input, shape index: {}]
  %s1 = inlined_call_operand.hbm [shape: f32[4,128], index: 1, kind: input, shape index: {}]
  %s2 = inlined_call_operand.hbm [shape: f32[8,32], index: 2, kind: output, shape index: {0}]
  %s3 = inlined_call_operand.hbm [shape: f32[2,32], index: 3, kind: output, shape index: {1}]
  %4 = xla_tuple %s2, %s3
  %s5 = sld [smem:[#allocation0]]
  $region34: #{tpu_custom_call.1} parent=0
    _
  %s7 = ssub.s32 1, %s5
  %s8 = scalar_select 0, %s7, %s5
  $region1: #{tpu_custom_call.1} parent=0
    #allocation2 [shape = 'u8[4096]{0}', space=vmem, size = 0x1000, scoped, tag = 'input window, operand 0, single buffered']
    #allocation3 [shape = 's32[1]{0}', space=sflag, size = 0x4, scoped, tag = 'scoped memory for tpu_custom_call.1']
    #allocation4 [shape = 's32[1]{0}', space=sflag, size = 0x4, scoped, tag = 'scoped memory for tpu_custom_call.1']
    #allocation5 [shape = 'u8[2048]{0}', space=vmem, size = 0x800, scoped, tag = 'input window, operand 1, single buffered']
    #allocation6 [shape = 's32[1]{0}', space=sflag, size = 0x4, scoped, tag = 'scoped memory for tpu_custom_call.1']
    #allocation7 [shape = 'u8[4096]{0}', space=vmem, size = 0x1000, scoped, tag = 'output window, operand 0, single buffered']
    #allocation8 [shape = 'u8[1024]{0}', space=vmem, size = 0x400, scoped, tag = 'output window, operand 1, single buffered']
    #allocation9 [shape = 's32[1]{0}', space=sflag, size = 0x4, scoped, tag = 'scoped memory for tpu_custom_call.1']
    %9 = vsyncpa [#allocation3], 0
    %10 = vsyncpa [#allocation6], 0
    %11 = vsyncpa [#allocation4], 0
    %12 = vsyncpa [#allocation9], 0
    // Predicated region
    $region2: #{tpu_custom_call.1} parent=1 // pred_check
      _
    $region3: #{tpu_custom_call.1} parent=1 // pred_check_branch
      %14 = sbr.rel (0) target = $region5
    $region4: #{tpu_custom_call.1} parent=1 // pred_region
      %16 = vsyncadd [#allocation3], 0
      %s18 = sshll.u32 %s0, 4
      %s19 = int_to_ptr.hbm [resolvable:$true] %s18
      %s20 = sshll.u32 [#allocation2], 4
      %s21 = int_to_ptr.vmem [resolvable:$true] %s20
      %23 = dma.hbm_to_vmem [thread:$0]  %s19, 128, %s21, [#allocation3]
    $region5: #{tpu_custom_call.1} parent=1 // pred_fallthru
      _
    // Predicated region
    $region6: #{tpu_custom_call.1} parent=1 // pred_check
      _
    $region7: #{tpu_custom_call.1} parent=1 // pred_check_branch
      %25 = sbr.rel (0) target = $region9
    $region8: #{tpu_custom_call.1} parent=1 // pred_region
      %27 = vsyncadd [#allocation6], 0
      %s29 = sshll.u32 %s1, 4
      %s30 = int_to_ptr.hbm [resolvable:$true] %s29
      %s31 = sshll.u32 [#allocation5], 4
      %s32 = int_to_ptr.vmem [resolvable:$true] %s31
      %34 = dma.hbm_to_vmem [thread:$0]  %s30, 64, %s32, [#allocation6]
    $region9: #{tpu_custom_call.1} parent=1 // pred_fallthru
      _
    // Predicated region
    $region10: #{tpu_custom_call.1} parent=1 // pred_check
      _
    $region11: #{tpu_custom_call.1} parent=1 // pred_check_branch
      %36 = sbr.rel (0) target = $region13
    $region12: #{tpu_custom_call.1} parent=1 // pred_region
      %38 = dma.done [#allocation3], 128
    $region13: #{tpu_custom_call.1} parent=1 // pred_fallthru
      _
    // Predicated region
    $region14: #{tpu_custom_call.1} parent=1 // pred_check
      _
    $region15: #{tpu_custom_call.1} parent=1 // pred_check_branch
      %40 = sbr.rel (0) target = $region17
    $region16: #{tpu_custom_call.1} parent=1 // pred_region
      %42 = dma.done [#allocation6], 64
    $region17: #{tpu_custom_call.1} parent=1 // pred_fallthru
      _
    %v43 = vld [vmem:[#allocation2] sm:$0xff]
    %v44 = vld [vmem:[#allocation5] sm:$0x1]
    %v45 = vld [vmem:[#allocation5 + $0x1] sm:$0x1]
    %v46 = vld [vmem:[#allocation5 + $0x2] sm:$0x1]
    %v47 = vld [vmem:[#allocation5 + $0x3] sm:$0x1]
    %v48 = vrot.slane %v43, 4
    %v49 = vadd.f32 %v43, %v48
    %v50 = vrot.slane %v49, 2
    %v51 = vadd.f32 %v49, %v50
    %v52 = vrot.slane %v51, 1
    %v53 = vadd.f32 %v51, %v52
    %v54 = vrcp.pop 8.0
    %v55 = vmul.f32 8.0, %v54
    %v56 = vsub.f32 1.0, %v55
    %v57 = vmul.f32 %v54, %v56
    %v58 = vadd.f32 %v54, %v57
    %vm59 = vweird.f32 %v54
    %v60 = vsel %vm59, %v54, %v58
    %v61 = vmul.f32 %v53, %v60
    %v62 = vmul.f32 %v43, %v43
    %v63 = vrot.slane %v62, 4
    %v64 = vadd.f32 %v62, %v63
    %v65 = vrot.slane %v64, 2
    %v66 = vadd.f32 %v64, %v65
    %v67 = vrot.slane %v66, 1
    %v68 = vadd.f32 %v66, %v67
    %v69 = vmul.f32 %v68, %v60
    %v70 = vmul.f32 %v46, 0.0
    %v71 = vadd.f32 %v61, %v70
    %v72 = vmul.f32 %v47, 0.0
    %v73 = vadd.f32 %v69, %v72
    %v74 = vadd.f32 %v73, 1e-05
    %v75 = vmul.f32 %v71, %v71
    %v76 = vsub.f32 %v74, %v75
    %v77 = vrsqrt.pop %v76
    %v78 = vmul.f32 %v77, %v76
    %v79 = vmul.f32 %v78, %v77
    %v80 = vmul.f32 0.5, %v79
    %v81 = vsub.f32 1.5, %v80
    %v82 = vmul.f32 %v77, %v81
    %vm83 = vweird.f32 %v76
    %vm84 = vweird.f32 %v77
    %vm85 = vmor %vm83, %vm84
    %v86 = vsel %vm85, %v77, %v82
    %v87 = vmul.f32 %v44, %v86
    %v88 = vmul.f32 %v71, %v87
    %v89 = vsub.f32 %v45, %v88
    %v90 = vperm.slane %v87, 0
    %v91 = vmul.f32 %v43, %v90
    %v92 = vperm.slane %v89, 0
    %v93 = vadd.f32 %v91, %v92
    %94 = vst [vmem:[#allocation7] sm:$0xff] %v93
    %95 = vst [vmem:[#allocation8] sm:$0x1] %v71
    %96 = vst [vmem:[#allocation8 + $0x1] sm:$0x1] %v73
    // Predicated region
    $region18: #{tpu_custom_call.1} parent=1 // pred_check
      _
    $region19: #{tpu_custom_call.1} parent=1 // pred_check_branch
      %98 = sbr.rel (0) target = $region21
    $region20: #{tpu_custom_call.1} parent=1 // pred_region
      %100 = vsyncadd [#allocation4], 0
      %s102 = sshll.u32 [#allocation7], 4
      %s103 = int_to_ptr.vmem [resolvable:$true] %s102
      %s104 = sshll.u32 %s2, 4
      %s105 = int_to_ptr.hbm [resolvable:$true] %s104
      %107 = dma.vmem_to_hbm [thread:$0]  %s103, 128, %s105, [#allocation4]
    $region21: #{tpu_custom_call.1} parent=1 // pred_fallthru
      _
    // Predicated region
    $region22: #{tpu_custom_call.1} parent=1 // pred_check
      _
    $region23: #{tpu_custom_call.1} parent=1 // pred_check_branch
      %109 = sbr.rel (0) target = $region25
    $region24: #{tpu_custom_call.1} parent=1 // pred_region
      %111 = vsyncadd [#allocation9], 0
      %s113 = sshll.u32 [#allocation8], 4
      %s114 = int_to_ptr.vmem [resolvable:$true] %s113
      %s115 = sshll.u32 %s3, 4
      %s116 = int_to_ptr.hbm [resolvable:$true] %s115
      %118 = dma.vmem_to_hbm [thread:$0]  %s114, 32, %s116, [#allocation9]
    $region25: #{tpu_custom_call.1} parent=1 // pred_fallthru
      _
    // Predicated region
    $region26: #{tpu_custom_call.1} parent=1 // pred_check
      _
    $region27: #{tpu_custom_call.1} parent=1 // pred_check_branch
      %120 = sbr.rel (0) target = $region29
    $region28: #{tpu_custom_call.1} parent=1 // pred_region
      %122 = dma.done [#allocation4], 128
    $region29: #{tpu_custom_call.1} parent=1 // pred_fallthru
      _
    // Predicated region
    $region30: #{tpu_custom_call.1} parent=1 // pred_check
      _
    $region31: #{tpu_custom_call.1} parent=1 // pred_check_branch
      %124 = sbr.rel (0) target = $region33
    $region32: #{tpu_custom_call.1} parent=1 // pred_region
      %126 = dma.done [#allocation9], 32
    $region33: #{tpu_custom_call.1} parent=1 // pred_fallthru
      _
    %127 = vsyncpa [#allocation3], 1
    %128 = vsyncpa [#allocation6], 1
    %129 = vsyncpa [#allocation4], 1
    %130 = vsyncpa [#allocation9], 1

</llo_original>
